<compile_context>
chip_gen: v6e
topology: v6e:2x2x1
jax: 0.10.0
libtpu: 0.0.40
codegen_flags: <defaults>
</compile_context>

<pallas_src>
import jax
import jax.numpy as jnp
from jax.experimental import pallas as pl
from jax.experimental.pallas import tpu as pltpu


HIDDEN = 256


def _critic_kernel(state_ref, action_ref,
                   w1s_ref, w1a_ref, b14_ref,
                   w2_ref, b2_ref, w5_ref, b5_ref,
                   w3_ref, b3_ref, w6_ref, b6_ref,
                   q1_ref, q2_ref):
    # ---- Fused layer 1 of BOTH heads: (B, 2*HIDDEN). Concat folded into weights.
    # Kept adjacent and unbranched so v7x's MRB can accumulate both dots in place.
    hg = (jnp.dot(state_ref[...], w1s_ref[...], preferred_element_type=jnp.float32)
          + jnp.dot(action_ref[...], w1a_ref[...], preferred_element_type=jnp.float32)
          + b14_ref[...])
    hg = jnp.maximum(hg, 0.0)
    h = hg[:, :HIDDEN]          # Q1-head activations (lane-aligned slice)
    g = hg[:, HIDDEN:]          # Q2-head activations

    # ---- Layer 2 of each head (256x256 matmuls, f32 accumulation).
    h = jnp.maximum(
        jnp.dot(h, w2_ref[...], preferred_element_type=jnp.float32) + b2_ref[...], 0.0)
    g = jnp.maximum(
        jnp.dot(g, w5_ref[...], preferred_element_type=jnp.float32) + b5_ref[...], 0.0)

    # ---- Output heads (256 -> 1): VPU multiply + XLU lane reduction.
    # Replaces the former padded (B,512)@(512,128) MXU matmul with 256 KiB of
    # mostly-zero weights; the reduce rides the otherwise-idle XLU slot.
    q1_ref[...] = jnp.sum(h * w3_ref[...], axis=-1, keepdims=True) + b3_ref[...]
    q2_ref[...] = jnp.sum(g * w6_ref[...], axis=-1, keepdims=True) + b6_ref[...]


def pack_critic_params(p, state_dim, action_dim):
    """One-time repack of PyTorch-style Linear params into the fused kernel layout."""
    w14 = jnp.concatenate([p["w1"], p["w4"]], axis=1)            # (K, 512)
    return {
        "w1s": w14[:state_dim],                                  # (state_dim, 512)
        "w1a": w14[state_dim:],                                  # (action_dim, 512)
        "b14": jnp.concatenate([p["b1"], p["b4"]], axis=1),      # (1, 512)
        "w2": p["w2"], "b2": p["b2"],
        "w5": p["w5"], "b5": p["b5"],
        "w3": p["w3"].T,                                         # (1, 256) row vector
        "b3": p["b3"],                                           # (1, 1)
        "w6": p["w6"].T,                                         # (1, 256) row vector
        "b6": p["b6"],                                           # (1, 1)
    }


@jax.jit
def critic_forward(state, action, packed):
    """Replicates Critic.forward(state, action) -> (q1, q2)."""
    B = state.shape[0]
    K = state.shape[1] + action.shape[1]

    vmem = pl.BlockSpec(memory_space=pltpu.MemorySpace.VMEM)
    args = (state, action,
            packed["w1s"], packed["w1a"], packed["b14"],
            packed["w2"], packed["b2"], packed["w5"], packed["b5"],
            packed["w3"], packed["b3"], packed["w6"], packed["b6"])

    # Honest cost hint: layer1 (K -> 512), two 256x256 matmuls, two 256->1 reductions.
    flops = (2 * B * K * 2 * HIDDEN
             + 2 * (2 * B * HIDDEN * HIDDEN)
             + 2 * (2 * B * HIDDEN))
    bytes_accessed = 4 * (sum(int(a.size) for a in args) + 2 * B)

    q1, q2 = pl.pallas_call(
        _critic_kernel,
        out_shape=(jax.ShapeDtypeStruct((B, 1), jnp.float32),
                   jax.ShapeDtypeStruct((B, 1), jnp.float32)),
        in_specs=[vmem] * len(args),
        out_specs=(vmem, vmem),
        cost_estimate=pl.CostEstimate(flops=flops, transcendentals=0,
                                      bytes_accessed=bytes_accessed),
    )(*args)
    return q1, q2


def init_critic_params(key, state_dim, action_dim):
    """PyTorch nn.Linear default init: U(-1/sqrt(fan_in), 1/sqrt(fan_in)).
       Weights stored as (in_features, out_features); biases as (1, out_features)."""
    dims = [
        ("1", state_dim + action_dim, HIDDEN),
        ("2", HIDDEN, HIDDEN),
        ("3", HIDDEN, 1),
        ("4", state_dim + action_dim, HIDDEN),
        ("5", HIDDEN, HIDDEN),
        ("6", HIDDEN, 1),
    ]
    params = {}
    for name, fan_in, fan_out in dims:
        key, kw, kb = jax.random.split(key, 3)
        bound = 1.0 / jnp.sqrt(float(fan_in))
        params[f"w{name}"] = jax.random.uniform(
            kw, (fan_in, fan_out), jnp.float32, minval=-bound, maxval=bound)
        params[f"b{name}"] = jax.random.uniform(
            kb, (1, fan_out), jnp.float32, minval=-bound, maxval=bound)
    return params


if __name__ == "__main__":
    key = jax.random.PRNGKey(0)
    k_params, k_state, k_action = jax.random.split(key, 3)

    batch = 8
    state_dim = 17
    action_dim = 6

    raw = init_critic_params(k_params, state_dim, action_dim)
    packed = pack_critic_params(raw, state_dim, action_dim)

    state = jax.random.normal(k_state, (batch, state_dim), jnp.float32)
    action = jax.random.normal(k_action, (batch, action_dim), jnp.float32)

    q1, q2 = critic_forward(state, action, packed)
    jax.block_until_ready((q1, q2))

    # Plain-JAX reference of the original (unfused) math.
    sa = jnp.concatenate([state, action], axis=1)
    h = jnp.maximum(sa @ raw["w1"] + raw["b1"], 0.0)
    h = jnp.maximum(h @ raw["w2"] + raw["b2"], 0.0)
    q1_ref = h @ raw["w3"] + raw["b3"]
    g = jnp.maximum(sa @ raw["w4"] + raw["b4"], 0.0)
    g = jnp.maximum(g @ raw["w5"] + raw["b5"], 0.0)
    q2_ref = g @ raw["w6"] + raw["b6"]

    assert q1.shape == (batch, 1) and q2.shape == (batch, 1)
    assert jnp.allclose(q1, q1_ref, atol=1e-4, rtol=1e-4)
    assert jnp.allclose(q2, q2_ref, atol=1e-4, rtol=1e-4)

    print("KERNEL_OK")
</pallas_src>

<mosaic_0001>
module attributes {stable_mosaic.version = 11 : i64} {
  func.func @_critic_kernel(%arg0: memref<8x17xf32, #tpu.memory_space<vmem>>, %arg1: memref<8x6xf32, #tpu.memory_space<vmem>>, %arg2: memref<17x512xf32, #tpu.memory_space<vmem>>, %arg3: memref<6x512xf32, #tpu.memory_space<vmem>>, %arg4: memref<1x512xf32, #tpu.memory_space<vmem>>, %arg5: memref<256x256xf32, #tpu.memory_space<vmem>>, %arg6: memref<1x256xf32, #tpu.memory_space<vmem>>, %arg7: memref<256x256xf32, #tpu.memory_space<vmem>>, %arg8: memref<1x256xf32, #tpu.memory_space<vmem>>, %arg9: memref<1x256xf32, #tpu.memory_space<vmem>>, %arg10: memref<1x1xf32, #tpu.memory_space<vmem>>, %arg11: memref<1x256xf32, #tpu.memory_space<vmem>>, %arg12: memref<1x1xf32, #tpu.memory_space<vmem>>, %arg13: memref<8x1xf32, #tpu.memory_space<vmem>>, %arg14: memref<8x1xf32, #tpu.memory_space<vmem>>) attributes {dimension_semantics = [], scalar_prefetch = 0 : i64, scratch_operands = 0 : i64, tpu.core_type = #tpu.core_type<tc>} {
    %c0 = arith.constant 0 : index
    %c0_0 = arith.constant 0 : index
    %0 = vector.load %arg0[%c0, %c0_0] : memref<8x17xf32, #tpu.memory_space<vmem>>, vector<8x17xf32>
    %c0_1 = arith.constant 0 : index
    %c0_2 = arith.constant 0 : index
    %1 = vector.load %arg2[%c0_1, %c0_2] : memref<17x512xf32, #tpu.memory_space<vmem>>, vector<17x512xf32>
    %cst = arith.constant dense<0.000000e+00> : vector<8x512xf32>
    %2 = tpu.matmul %0, %1, %cst {dimension_numbers = #tpu.dot_dimension_numbers<[1], [0], [0], [1], [0, 0, 1, 1], [], []>} : vector<8x17xf32>, vector<17x512xf32>, vector<8x512xf32> -> vector<8x512xf32>
    %c0_3 = arith.constant 0 : index
    %c0_4 = arith.constant 0 : index
    %3 = vector.load %arg1[%c0_3, %c0_4] : memref<8x6xf32, #tpu.memory_space<vmem>>, vector<8x6xf32>
    %c0_5 = arith.constant 0 : index
    %c0_6 = arith.constant 0 : index
    %4 = vector.load %arg3[%c0_5, %c0_6] : memref<6x512xf32, #tpu.memory_space<vmem>>, vector<6x512xf32>
    %cst_7 = arith.constant dense<0.000000e+00> : vector<8x512xf32>
    %5 = tpu.matmul %3, %4, %cst_7 {dimension_numbers = #tpu.dot_dimension_numbers<[1], [0], [0], [1], [0, 0, 1, 1], [], []>} : vector<8x6xf32>, vector<6x512xf32>, vector<8x512xf32> -> vector<8x512xf32>
    %6 = arith.addf %2, %5 : vector<8x512xf32>
    %c0_8 = arith.constant 0 : index
    %c0_9 = arith.constant 0 : index
    %7 = vector.load %arg4[%c0_8, %c0_9] : memref<1x512xf32, #tpu.memory_space<vmem>>, vector<1x512xf32>
    %8 = vector.broadcast %7 : vector<1x512xf32> to vector<8x512xf32>
    %9 = arith.addf %6, %8 : vector<8x512xf32>
    %cst_10 = arith.constant 0.000000e+00 : f32
    %10 = vector.broadcast %cst_10 : f32 to vector<8x512xf32>
    %11 = arith.maximumf %9, %10 : vector<8x512xf32>
    %12 = vector.extract_strided_slice %11 {offsets = [0, 0], sizes = [8, 256], strides = [1, 1]} : vector<8x512xf32> to vector<8x256xf32>
    %13 = vector.extract_strided_slice %11 {offsets = [0, 256], sizes = [8, 256], strides = [1, 1]} : vector<8x512xf32> to vector<8x256xf32>
    %c0_11 = arith.constant 0 : index
    %c0_12 = arith.constant 0 : index
    %14 = vector.load %arg5[%c0_11, %c0_12] : memref<256x256xf32, #tpu.memory_space<vmem>>, vector<256x256xf32>
    %cst_13 = arith.constant dense<0.000000e+00> : vector<8x256xf32>
    %15 = tpu.matmul %12, %14, %cst_13 {dimension_numbers = #tpu.dot_dimension_numbers<[1], [0], [0], [1], [0, 0, 1, 1], [], []>} : vector<8x256xf32>, vector<256x256xf32>, vector<8x256xf32> -> vector<8x256xf32>
    %c0_14 = arith.constant 0 : index
    %c0_15 = arith.constant 0 : index
    %16 = vector.load %arg6[%c0_14, %c0_15] : memref<1x256xf32, #tpu.memory_space<vmem>>, vector<1x256xf32>
    %17 = vector.broadcast %16 : vector<1x256xf32> to vector<8x256xf32>
    %18 = arith.addf %15, %17 : vector<8x256xf32>
    %cst_16 = arith.constant 0.000000e+00 : f32
    %19 = vector.broadcast %cst_16 : f32 to vector<8x256xf32>
    %20 = arith.maximumf %18, %19 : vector<8x256xf32>
    %c0_17 = arith.constant 0 : index
    %c0_18 = arith.constant 0 : index
    %21 = vector.load %arg7[%c0_17, %c0_18] : memref<256x256xf32, #tpu.memory_space<vmem>>, vector<256x256xf32>
    %cst_19 = arith.constant dense<0.000000e+00> : vector<8x256xf32>
    %22 = tpu.matmul %13, %21, %cst_19 {dimension_numbers = #tpu.dot_dimension_numbers<[1], [0], [0], [1], [0, 0, 1, 1], [], []>} : vector<8x256xf32>, vector<256x256xf32>, vector<8x256xf32> -> vector<8x256xf32>
    %c0_20 = arith.constant 0 : index
    %c0_21 = arith.constant 0 : index
    %23 = vector.load %arg8[%c0_20, %c0_21] : memref<1x256xf32, #tpu.memory_space<vmem>>, vector<1x256xf32>
    %24 = vector.broadcast %23 : vector<1x256xf32> to vector<8x256xf32>
    %25 = arith.addf %22, %24 : vector<8x256xf32>
    %cst_22 = arith.constant 0.000000e+00 : f32
    %26 = vector.broadcast %cst_22 : f32 to vector<8x256xf32>
    %27 = arith.maximumf %25, %26 : vector<8x256xf32>
    %c0_23 = arith.constant 0 : index
    %c0_24 = arith.constant 0 : index
    %28 = vector.load %arg9[%c0_23, %c0_24] : memref<1x256xf32, #tpu.memory_space<vmem>>, vector<1x256xf32>
    %29 = vector.broadcast %28 : vector<1x256xf32> to vector<8x256xf32>
    %30 = arith.mulf %20, %29 : vector<8x256xf32>
    %cst_25 = arith.constant dense<0.000000e+00> : vector<8xf32>
    %31 = vector.multi_reduction <add>, %30, %cst_25 [1] : vector<8x256xf32> to vector<8xf32>
    %32 = vector.shape_cast %31 : vector<8xf32> to vector<8x1xf32>
    %c0_26 = arith.constant 0 : index
    %c0_27 = arith.constant 0 : index
    %33 = vector.load %arg10[%c0_26, %c0_27] : memref<1x1xf32, #tpu.memory_space<vmem>>, vector<1x1xf32>
    %34 = vector.broadcast %33 : vector<1x1xf32> to vector<8x1xf32>
    %35 = arith.addf %32, %34 : vector<8x1xf32>
    %c0_28 = arith.constant 0 : index
    %c0_29 = arith.constant 0 : index
    %36 = vector.load %arg13[%c0_28, %c0_29] : memref<8x1xf32, #tpu.memory_space<vmem>>, vector<8x1xf32>
    tpu.vector_store %arg13[%c0_28, %c0_29], %35 {strides = array<i32>} : memref<8x1xf32, #tpu.memory_space<vmem>>, vector<8x1xf32>,
    %c0_30 = arith.constant 0 : index
    %c0_31 = arith.constant 0 : index
    %37 = vector.load %arg11[%c0_30, %c0_31] : memref<1x256xf32, #tpu.memory_space<vmem>>, vector<1x256xf32>
    %38 = vector.broadcast %37 : vector<1x256xf32> to vector<8x256xf32>
    %39 = arith.mulf %27, %38 : vector<8x256xf32>
    %cst_32 = arith.constant dense<0.000000e+00> : vector<8xf32>
    %40 = vector.multi_reduction <add>, %39, %cst_32 [1] : vector<8x256xf32> to vector<8xf32>
    %41 = vector.shape_cast %40 : vector<8xf32> to vector<8x1xf32>
    %c0_33 = arith.constant 0 : index
    %c0_34 = arith.constant 0 : index
    %42 = vector.load %arg12[%c0_33, %c0_34] : memref<1x1xf32, #tpu.memory_space<vmem>>, vector<1x1xf32>
    %43 = vector.broadcast %42 : vector<1x1xf32> to vector<8x1xf32>
    %44 = arith.addf %41, %43 : vector<8x1xf32>
    %c0_35 = arith.constant 0 : index
    %c0_36 = arith.constant 0 : index
    %45 = vector.load %arg14[%c0_35, %c0_36] : memref<8x1xf32, #tpu.memory_space<vmem>>, vector<8x1xf32>
    tpu.vector_store %arg14[%c0_35, %c0_36], %44 {strides = array<i32>} : memref<8x1xf32, #tpu.memory_space<vmem>>, vector<8x1xf32>,
    return
  }
}

</mosaic_0001>

<llo_original>
// kernel: critic_forward.1
$region0: #{critic_forward.1}
  #allocation0 [shape = 'u32[]', space=smem, size = 0x4, offset = 0x4, fixed_abs, tag = 'smem constant byte address 0x4 - core index']
  #allocation1 [shape = 'u32[144,128]{1,0:T(1,128)}', space=vmem, size = 0x12000, scoped, tag = 'internal scratch']
  #allocation2 [shape = 'f32[1,1]{1,0:T(1,128)S(1)}', space=vmem, size = 0x200, scoped, tag = 'scoped memory for critic_forward.1']
  #allocation3 [shape = 'f32[1,1]{1,0:T(1,128)S(1)}', space=vmem, size = 0x200, scoped, tag = 'scoped memory for critic_forward.1']
  %s0 = inlined_call_operand.hbm [shape: f32[8,17], index: 0, kind: input, shape index: {}]
  %s1 = inlined_call_operand.hbm [shape: f32[8,6], index: 1, kind: input, shape index: {}]
  %s2 = inlined_call_operand.hbm [shape: f32[17,512], index: 2, kind: input, shape index: {}]
  %s3 = inlined_call_operand.hbm [shape: f32[6,512], index: 3, kind: input, shape index: {}]
  %s4 = inlined_call_operand.vmem [shape: f32[1,512], index: 4, kind: input, shape index: {}]
  %s5 = inlined_call_operand.hbm [shape: f32[256,256], index: 5, kind: input, shape index: {}]
  %s6 = inlined_call_operand.vmem [shape: f32[1,256], index: 6, kind: input, shape index: {}]
  %s7 = inlined_call_operand.hbm [shape: f32[256,256], index: 7, kind: input, shape index: {}]
  %s8 = inlined_call_operand.vmem [shape: f32[1,256], index: 8, kind: input, shape index: {}]
  %s9 = inlined_call_operand.vmem [shape: f32[1,256], index: 9, kind: input, shape index: {}]
  %s10 = inlined_call_operand.<no memory space> [shape: f32[1,1], index: 10, kind: input, shape index: {}]
  %s11 = inlined_call_operand.vmem [shape: f32[1,256], index: 11, kind: input, shape index: {}]
  %s12 = inlined_call_operand.<no memory space> [shape: f32[1,1], index: 12, kind: input, shape index: {}]
  %s13 = inlined_call_operand.vmem [shape: f32[8,1], index: 13, kind: output, shape index: {0}]
  %s14 = inlined_call_operand.vmem [shape: f32[8,1], index: 14, kind: output, shape index: {1}]
  %15 = xla_tuple %s13, %s14
  %s16 = sld [smem:[#allocation0]]
  $region94: #{critic_forward.1} parent=0
    _
  %s18 = ssub.s32 1, %s16
  %s19 = scalar_select 0, %s18, %s16
  %v20 = vstv %s10
  %21 = vst [vmem:[#allocation2] sm:$0x1] %v20
  %v22 = vstv %s12
  %23 = vst [vmem:[#allocation3] sm:$0x1] %v22
  $region1: #{critic_forward.1} parent=0
    #allocation4 [shape = 'u8[4096]{0}', space=vmem, size = 0x1000, scoped, tag = 'input window, operand 0, single buffered']
    #allocation5 [shape = 's32[1]{0}', space=sflag, size = 0x4, scoped, tag = 'scoped memory for critic_forward.1']
    #allocation6 [shape = 'u8[4096]{0}', space=vmem, size = 0x1000, scoped, tag = 'input window, operand 1, single buffered']
    #allocation7 [shape = 's32[1]{0}', space=sflag, size = 0x4, scoped, tag = 'scoped memory for critic_forward.1']
    #allocation8 [shape = 'u8[49152]{0}', space=vmem, size = 0xc000, scoped, tag = 'input window, operand 2, single buffered']
    #allocation9 [shape = 'u8[16384]{0}', space=vmem, size = 0x4000, scoped, tag = 'input window, operand 3, single buffered']
    #allocation10 [shape = 's32[1]{0}', space=sflag, size = 0x4, scoped, tag = 'scoped memory for critic_forward.1']
    #allocation11 [shape = 'u8[262144]{0}', space=vmem, size = 0x40000, scoped, tag = 'input window, operand 5, single buffered']
    #allocation12 [shape = 'u8[262144]{0}', space=vmem, size = 0x40000, scoped, tag = 'input window, operand 7, single buffered']
    #allocation13 [shape = 's32[1]{0}', space=sflag, size = 0x4, scoped, tag = 'scoped memory for critic_forward.1']
    %24 = vsyncpa [#allocation5], 0
    %25 = vsyncpa [#allocation7], 0
    %26 = vsyncpa [#allocation10], 0
    %27 = vsyncpa [#allocation13], 0
    // Predicated region
    $region2: #{critic_forward.1} parent=1 // pred_check
      _
    $region3: #{critic_forward.1} parent=1 // pred_check_branch
      %29 = sbr.rel (0) target = $region5
    $region4: #{critic_forward.1} parent=1 // pred_region
      %s31 = ssub.s32 128, 128
      %32 = vsyncadd [#allocation5], %s31
      %s34 = sshll.u32 [#allocation4], 4
      %s35 = int_to_ptr.vmem [resolvable:$true] %s34
      %37 = dma.hbm_to_vmem [thread:$0]  %s0, 128, %s35, [#allocation5]
    $region5: #{critic_forward.1} parent=1 // pred_fallthru
      _
    // Predicated region
    $region6: #{critic_forward.1} parent=1 // pred_check
      _
    $region7: #{critic_forward.1} parent=1 // pred_check_branch
      %39 = sbr.rel (0) target = $region9
    $region8: #{critic_forward.1} parent=1 // pred_region
      %s41 = ssub.s32 128, 128
      %42 = vsyncadd [#allocation7], %s41
      %s44 = sshll.u32 [#allocation6], 4
      %s45 = int_to_ptr.vmem [resolvable:$true] %s44
      %47 = dma.hbm_to_vmem [thread:$0]  %s1, 128, %s45, [#allocation7]
    $region9: #{critic_forward.1} parent=1 // pred_fallthru
      _
    // Predicated region
    $region10: #{critic_forward.1} parent=1 // pred_check
      _
    $region11: #{critic_forward.1} parent=1 // pred_check_branch
      %49 = sbr.rel (0) target = $region13
    $region12: #{critic_forward.1} parent=1 // pred_region
      %s51 = ssub.s32 1536, 1536
      %52 = vsyncadd [#allocation7], %s51
      %s53 = sshll.u32 [#allocation8], 4
      %s54 = int_to_ptr.vmem [resolvable:$true] %s53
      %59 = dma.hbm_to_vmem [thread:$0]  %s2, 1536, %s54, [#allocation7], 512, 512, 32
    $region13: #{critic_forward.1} parent=1 // pred_fallthru
      _
    // Predicated region
    $region14: #{critic_forward.1} parent=1 // pred_check
      _
    $region15: #{critic_forward.1} parent=1 // pred_check_branch
      %61 = sbr.rel (0) target = $region17
    $region16: #{critic_forward.1} parent=1 // pred_region
      %s63 = ssub.s32 512, 512
      %64 = vsyncadd [#allocation10], %s63
      %s66 = sshll.u32 [#allocation9], 4
      %s67 = int_to_ptr.vmem [resolvable:$true] %s66
      %69 = dma.hbm_to_vmem [thread:$0]  %s3, 512, %s67, [#allocation10]
    $region17: #{critic_forward.1} parent=1 // pred_fallthru
      _
    // Predicated region
    $region18: #{critic_forward.1} parent=1 // pred_check
      _
    $region19: #{critic_forward.1} parent=1 // pred_check_branch
      %71 = sbr.rel (0) target = $region21
    $region20: #{critic_forward.1} parent=1 // pred_region
      _
    $region21: #{critic_forward.1} parent=1 // pred_fallthru
      _
    // Predicated region
    $region22: #{critic_forward.1} parent=1 // pred_check
      _
    $region23: #{critic_forward.1} parent=1 // pred_check_branch
      %73 = sbr.rel (0) target = $region25
    $region24: #{critic_forward.1} parent=1 // pred_region
      %s75 = ssub.s32 8192, 8192
      %76 = vsyncadd [#allocation10], %s75
      %s77 = sshll.u32 [#allocation11], 4
      %s78 = int_to_ptr.vmem [resolvable:$true] %s77
      %83 = dma.hbm_to_vmem [thread:$0]  %s5, 8192, %s78, [#allocation10], 256, 256, 16
    $region25: #{critic_forward.1} parent=1 // pred_fallthru
      _
    // Predicated region
    $region26: #{critic_forward.1} parent=1 // pred_check
      _
    $region27: #{critic_forward.1} parent=1 // pred_check_branch
      %85 = sbr.rel (0) target = $region29
    $region28: #{critic_forward.1} parent=1 // pred_region
      _
    $region29: #{critic_forward.1} parent=1 // pred_fallthru
      _
    // Predicated region
    $region30: #{critic_forward.1} parent=1 // pred_check
      _
    $region31: #{critic_forward.1} parent=1 // pred_check_branch
      %87 = sbr.rel (0) target = $region33
    $region32: #{critic_forward.1} parent=1 // pred_region
      %s89 = ssub.s32 8192, 8192
      %90 = vsyncadd [#allocation13], %s89
      %s91 = sshll.u32 [#allocation12], 4
      %s92 = int_to_ptr.vmem [resolvable:$true] %s91
      %97 = dma.hbm_to_vmem [thread:$0]  %s7, 8192, %s92, [#allocation13], 256, 256, 16
    $region33: #{critic_forward.1} parent=1 // pred_fallthru
      _
    // Predicated region
    $region34: #{critic_forward.1} parent=1 // pred_check
      _
    $region35: #{critic_forward.1} parent=1 // pred_check_branch
      %99 = sbr.rel (0) target = $region37
    $region36: #{critic_forward.1} parent=1 // pred_region
      _
    $region37: #{critic_forward.1} parent=1 // pred_fallthru
      _
    // Predicated region
    $region38: #{critic_forward.1} parent=1 // pred_check
      _
    $region39: #{critic_forward.1} parent=1 // pred_check_branch
      %101 = sbr.rel (0) target = $region41
    $region40: #{critic_forward.1} parent=1 // pred_region
      _
    $region41: #{critic_forward.1} parent=1 // pred_fallthru
      _
    // Predicated region
    $region42: #{critic_forward.1} parent=1 // pred_check
      _
    $region43: #{critic_forward.1} parent=1 // pred_check_branch
      %103 = sbr.rel (0) target = $region45
    $region44: #{critic_forward.1} parent=1 // pred_region
      _
    $region45: #{critic_forward.1} parent=1 // pred_fallthru
      _
    // Predicated region
    $region46: #{critic_forward.1} parent=1 // pred_check
      _
    $region47: #{critic_forward.1} parent=1 // pred_check_branch
      %105 = sbr.rel (0) target = $region49
    $region48: #{critic_forward.1} parent=1 // pred_region
      _
    $region49: #{critic_forward.1} parent=1 // pred_fallthru
      _
    // Predicated region
    $region50: #{critic_forward.1} parent=1 // pred_check
      _
    $region51: #{critic_forward.1} parent=1 // pred_check_branch
      %107 = sbr.rel (0) target = $region53
    $region52: #{critic_forward.1} parent=1 // pred_region
      _
    $region53: #{critic_forward.1} parent=1 // pred_fallthru
      _
    // Predicated region
    $region54: #{critic_forward.1} parent=1 // pred_check
      _
    $region55: #{critic_forward.1} parent=1 // pred_check_branch
      %109 = sbr.rel (0) target = $region57
    $region56: #{critic_forward.1} parent=1 // pred_region
      %110 = dma.done [#allocation5], 128
    $region57: #{critic_forward.1} parent=1 // pred_fallthru
      _
    // Predicated region
    $region58: #{critic_forward.1} parent=1 // pred_check
      _
    $region59: #{critic_forward.1} parent=1 // pred_check_branch
      %112 = sbr.rel (0) target = $region61
    $region60: #{critic_forward.1} parent=1 // pred_region
      %113 = dma.done [#allocation7], 128
    $region61: #{critic_forward.1} parent=1 // pred_fallthru
      _
    // Predicated region
    $region62: #{critic_forward.1} parent=1 // pred_check
      _
    $region63: #{critic_forward.1} parent=1 // pred_check_branch
      %115 = sbr.rel (0) target = $region65
    $region64: #{critic_forward.1} parent=1 // pred_region
      %116 = dma.done [#allocation7], 1536
    $region65: #{critic_forward.1} parent=1 // pred_fallthru
      _
    // Predicated region
    $region66: #{critic_forward.1} parent=1 // pred_check
      _
    $region67: #{critic_forward.1} parent=1 // pred_check_branch
      %118 = sbr.rel (0) target = $region69
    $region68: #{critic_forward.1} parent=1 // pred_region
      %119 = dma.done [#allocation10], 512
    $region69: #{critic_forward.1} parent=1 // pred_fallthru
      _
    // Predicated region
    $region70: #{critic_forward.1} parent=1 // pred_check
      _
    $region71: #{critic_forward.1} parent=1 // pred_check_branch
      %121 = sbr.rel (0) target = $region73
    $region72: #{critic_forward.1} parent=1 // pred_region
      %122 = dma.done [#allocation10], 8192
    $region73: #{critic_forward.1} parent=1 // pred_fallthru
      _
    // Predicated region
    $region74: #{critic_forward.1} parent=1 // pred_check
      _
    $region75: #{critic_forward.1} parent=1 // pred_check_branch
      %124 = sbr.rel (0) target = $region77
    $region76: #{critic_forward.1} parent=1 // pred_region
      %125 = dma.done [#allocation13], 8192
    $region77: #{critic_forward.1} parent=1 // pred_fallthru
      _
    %v126 = vld [vmem:[#allocation4] sm:$0xff]
    %v127 = vld [vmem:[#allocation8] sm:$0xff]
    %v128 = vld [vmem:[#allocation8 + $0x8] sm:$0xff]
    %v129 = vld [vmem:[#allocation8 + $0x10] sm:$0xff]
    %v130 = vld [vmem:[#allocation8 + $0x18] sm:$0xff]
    %v131 = vld [vmem:[#allocation8 + $0x20] sm:$0xff]
    %v132 = vld [vmem:[#allocation8 + $0x28] sm:$0xff]
    %v133 = vld [vmem:[#allocation8 + $0x30] sm:$0xff]
    %v134 = vld [vmem:[#allocation8 + $0x38] sm:$0xff]
    %v135 = vld [vmem:[#allocation8 + $0x40] sm:$0x1]
    %v136 = vld [vmem:[#allocation8 + $0x48] sm:$0x1]
    %v137 = vld [vmem:[#allocation8 + $0x50] sm:$0x1]
    %v138 = vld [vmem:[#allocation8 + $0x58] sm:$0x1]
    %v139 = vld [vmem:[#allocation6] sm:$0xff]
    %v140 = vld [vmem:[#allocation9] sm:$0x3f]
    %v141 = vld [vmem:[#allocation9 + $0x8] sm:$0x3f]
    %v142 = vld [vmem:[#allocation9 + $0x10] sm:$0x3f]
    %v143 = vld [vmem:[#allocation9 + $0x18] sm:$0x3f]
    %vm144 = vcmask 48128
    %v146 = vsel %vm144, %v139, 0
    %vm148 = vcmask 1045504
    %v150 = vsel %vm148, %v140, 0
    %v153 = vsel %vm148, %v141, 0
    %v156 = vsel %vm148, %v142, 0
    %v159 = vsel %vm148, %v143, 0
    %161 = vmatprep.subr.mxu0 0.0
    %162 = vmatpush1.msra.mxu0 0.0
    %163 = vmatprep.subr.mxu0 0.0
    %164 = vmatpush1.msra.mxu0 0.0
    %165 = vmatprep.subr.mxu0 0.0
    %166 = vmatpush1.msra.mxu0 0.0
    %167 = vmatprep.subr.mxu0 0.0
    %168 = vmatpush1.msra.mxu0 0.0
    %169 = vmatprep.subr.mxu0 0.0
    %170 = vmatpush1.msra.mxu0 0.0
    %171 = vmatprep.subr.mxu0 0.0
    %172 = vmatpush1.msra.mxu0 0.0
    %173 = vmatprep.subr.mxu0 0.0
    %174 = vmatpush1.msra.mxu0 0.0
    %175 = vmatprep.subr.mxu0 0.0
    %176 = vmatpush1.msra.mxu0 0.0
    %177 = vmatprep.subr.mxu0 0.0
    %178 = vmatpush1.msra.mxu0 0.0
    %179 = vmatprep.subr.mxu0 0.0
    %180 = vmatpush1.msra.mxu0 0.0
    %181 = vmatprep.subr.mxu0 0.0
    %182 = vmatpush1.msra.mxu0 0.0
    %183 = vmatprep.subr.mxu0 0.0
    %184 = vmatpush1.msra.mxu0 0.0
    %185 = vmatprep.subr.mxu0 0.0
    %186 = vmatpush1.msra.mxu0 0.0
    %187 = vmatprep.subr.mxu0 0.0
    %188 = vmatpush1.msra.mxu0 0.0
    %189 = vmatprep.subr.mxu0 0.0
    %190 = vmatpush1.msra.mxu0 0.0
    %191 = vmatprep.subr.mxu0 %v153
    %192 = vmatpush1.msra.mxu0 %v150
    %193 = vmatprep.subr.mxu0 0.0
    %194 = vmatpush2.msra.mxu0 0.0
    %195 = vmatprep.subr.mxu0 0.0
    %196 = vmatpush2.msra.mxu0 0.0
    %197 = vmatprep.subr.mxu0 0.0
    %198 = vmatpush2.msra.mxu0 0.0
    %199 = vmatprep.subr.mxu0 0.0
    %200 = vmatpush2.msra.mxu0 0.0
    %201 = vmatprep.subr.mxu0 0.0
    %202 = vmatpush2.msra.mxu0 0.0
    %203 = vmatprep.subr.mxu0 0.0
    %204 = vmatpush2.msra.mxu0 0.0
    %205 = vmatprep.subr.mxu0 0.0
    %206 = vmatpush2.msra.mxu0 0.0
    %207 = vmatprep.subr.mxu0 0.0
    %208 = vmatpush2.msra.mxu0 0.0
    %209 = vmatprep.subr.mxu0 0.0
    %210 = vmatpush2.msra.mxu0 0.0
    %211 = vmatprep.subr.mxu0 0.0
    %212 = vmatpush2.msra.mxu0 0.0
    %213 = vmatprep.subr.mxu0 0.0
    %214 = vmatpush2.msra.mxu0 0.0
    %215 = vmatprep.subr.mxu0 0.0
    %216 = vmatpush2.msra.mxu0 0.0
    %217 = vmatprep.subr.mxu0 0.0
    %218 = vmatpush2.msra.mxu0 0.0
    %219 = vmatprep.subr.mxu0 0.0
    %220 = vmatpush2.msra.mxu0 0.0
    %221 = vmatprep.subr.mxu0 0.0
    %222 = vmatpush2.msra.mxu0 0.0
    %223 = vmatprep.subr.mxu0 0.0
    %224 = vmatpush2.msra.mxu0 0.0
    %225 = vmatprep.mubr.f32.mxu0 0.0
    %226 = vmatmul.mubr.f32.gmra.mxu0 %v146
    %v227 = vpop.f32.mrf.mxu0
    %v228 = vadd.f32 0.0, %v227
    %v229 = vpop.f32.mrf.mxu0
    %v230 = vadd.f32 0.0, %v229
    %231 = vdwg.mxu0
    %232 = vmatprep.subr.mxu0 0.0
    %233 = vmatpush1.msra.mxu0 0.0
    %234 = vmatprep.subr.mxu0 0.0
    %235 = vmatpush1.msra.mxu0 0.0
    %236 = vmatprep.subr.mxu0 0.0
    %237 = vmatpush1.msra.mxu0 0.0
    %238 = vmatprep.subr.mxu0 0.0
    %239 = vmatpush1.msra.mxu0 0.0
    %240 = vmatprep.subr.mxu0 0.0
    %241 = vmatpush1.msra.mxu0 0.0
    %242 = vmatprep.subr.mxu0 0.0
    %243 = vmatpush1.msra.mxu0 0.0
    %244 = vmatprep.subr.mxu0 0.0
    %245 = vmatpush1.msra.mxu0 0.0
    %246 = vmatprep.subr.mxu0 0.0
    %247 = vmatpush1.msra.mxu0 0.0
    %248 = vmatprep.subr.mxu0 0.0
    %249 = vmatpush1.msra.mxu0 0.0
    %250 = vmatprep.subr.mxu0 0.0
    %251 = vmatpush1.msra.mxu0 0.0
    %252 = vmatprep.subr.mxu0 0.0
    %253 = vmatpush1.msra.mxu0 0.0
    %254 = vmatprep.subr.mxu0 0.0
    %255 = vmatpush1.msra.mxu0 0.0
    %256 = vmatprep.subr.mxu0 0.0
    %257 = vmatpush1.msra.mxu0 0.0
    %258 = vmatprep.subr.mxu0 0.0
    %259 = vmatpush1.msra.mxu0 0.0
    %260 = vmatprep.subr.mxu0 0.0
    %261 = vmatpush1.msra.mxu0 0.0
    %262 = vmatprep.subr.mxu0 %v159
    %263 = vmatpush1.msra.mxu0 %v156
    %264 = vmatprep.subr.mxu0 0.0
    %265 = vmatpush2.msra.mxu0 0.0
    %266 = vmatprep.subr.mxu0 0.0
    %267 = vmatpush2.msra.mxu0 0.0
    %268 = vmatprep.subr.mxu0 0.0
    %269 = vmatpush2.msra.mxu0 0.0
    %270 = vmatprep.subr.mxu0 0.0
    %271 = vmatpush2.msra.mxu0 0.0
    %272 = vmatprep.subr.mxu0 0.0
    %273 = vmatpush2.msra.mxu0 0.0
    %274 = vmatprep.subr.mxu0 0.0
    %275 = vmatpush2.msra.mxu0 0.0
    %276 = vmatprep.subr.mxu0 0.0
    %277 = vmatpush2.msra.mxu0 0.0
    %278 = vmatprep.subr.mxu0 0.0
    %279 = vmatpush2.msra.mxu0 0.0
    %280 = vmatprep.subr.mxu0 0.0
    %281 = vmatpush2.msra.mxu0 0.0
    %282 = vmatprep.subr.mxu0 0.0
    %283 = vmatpush2.msra.mxu0 0.0
    %284 = vmatprep.subr.mxu0 0.0
    %285 = vmatpush2.msra.mxu0 0.0
    %286 = vmatprep.subr.mxu0 0.0
    %287 = vmatpush2.msra.mxu0 0.0
    %288 = vmatprep.subr.mxu0 0.0
    %289 = vmatpush2.msra.mxu0 0.0
    %290 = vmatprep.subr.mxu0 0.0
    %291 = vmatpush2.msra.mxu0 0.0
    %292 = vmatprep.subr.mxu0 0.0
    %293 = vmatpush2.msra.mxu0 0.0
    %294 = vmatprep.subr.mxu0 0.0
    %295 = vmatpush2.msra.mxu0 0.0
    %296 = vmatprep.mubr.f32.mxu0 0.0
    %297 = vmatmul.mubr.f32.gmra.mxu0 %v146
    %v298 = vpop.f32.mrf.mxu0
    %v299 = vadd.f32 0.0, %v298
    %v300 = vpop.f32.mrf.mxu0
    %v301 = vadd.f32 0.0, %v300
    %302 = vdwg.mxu0
    %vm303 = vcmask 138240
    %v305 = vsel %vm303, %v126, 0
    %vm307 = vcmask 1040384
    %v309 = vsel %vm307, %v135, 0
    %v312 = vsel %vm307, %v136, 0
    %v315 = vsel %vm307, %v137, 0
    %v318 = vsel %vm307, %v138, 0
    %320 = vmatprep.subr.mxu0 0.0
    %321 = vmatpush1.msra.mxu0 0.0
    %322 = vmatprep.subr.mxu0 0.0
    %323 = vmatpush1.msra.mxu0 0.0
    %324 = vmatprep.subr.mxu0 0.0
    %325 = vmatpush1.msra.mxu0 0.0
    %326 = vmatprep.subr.mxu0 0.0
    %327 = vmatpush1.msra.mxu0 0.0
    %328 = vmatprep.subr.mxu0 0.0
    %329 = vmatpush1.msra.mxu0 0.0
    %330 = vmatprep.subr.mxu0 0.0
    %331 = vmatpush1.msra.mxu0 0.0
    %332 = vmatprep.subr.mxu0 0.0
    %333 = vmatpush1.msra.mxu0 0.0
    %334 = vmatprep.subr.mxu0 0.0
    %335 = vmatpush1.msra.mxu0 0.0
    %336 = vmatprep.subr.mxu0 0.0
    %337 = vmatpush1.msra.mxu0 0.0
    %338 = vmatprep.subr.mxu0 0.0
    %339 = vmatpush1.msra.mxu0 0.0
    %340 = vmatprep.subr.mxu0 0.0
    %341 = vmatpush1.msra.mxu0 0.0
    %342 = vmatprep.subr.mxu0 0.0
    %343 = vmatpush1.msra.mxu0 0.0
    %344 = vmatprep.subr.mxu0 0.0
    %345 = vmatpush1.msra.mxu0 0.0
    %346 = vmatprep.subr.mxu0 %v312
    %347 = vmatpush1.msra.mxu0 %v309
    %348 = vmatprep.subr.mxu0 %v132
    %349 = vmatpush1.msra.mxu0 %v131
    %350 = vmatprep.subr.mxu0 %v128
    %351 = vmatpush1.msra.mxu0 %v127
    %352 = vmatprep.subr.mxu0 0.0
    %353 = vmatpush2.msra.mxu0 0.0
    %354 = vmatprep.subr.mxu0 0.0
    %355 = vmatpush2.msra.mxu0 0.0
    %356 = vmatprep.subr.mxu0 0.0
    %357 = vmatpush2.msra.mxu0 0.0
    %358 = vmatprep.subr.mxu0 0.0
    %359 = vmatpush2.msra.mxu0 0.0
    %360 = vmatprep.subr.mxu0 0.0
    %361 = vmatpush2.msra.mxu0 0.0
    %362 = vmatprep.subr.mxu0 0.0
    %363 = vmatpush2.msra.mxu0 0.0
    %364 = vmatprep.subr.mxu0 0.0
    %365 = vmatpush2.msra.mxu0 0.0
    %366 = vmatprep.subr.mxu0 0.0
    %367 = vmatpush2.msra.mxu0 0.0
    %368 = vmatprep.subr.mxu0 0.0
    %369 = vmatpush2.msra.mxu0 0.0
    %370 = vmatprep.subr.mxu0 0.0
    %371 = vmatpush2.msra.mxu0 0.0
    %372 = vmatprep.subr.mxu0 0.0
    %373 = vmatpush2.msra.mxu0 0.0
    %374 = vmatprep.subr.mxu0 0.0
    %375 = vmatpush2.msra.mxu0 0.0
    %376 = vmatprep.subr.mxu0 0.0
    %377 = vmatpush2.msra.mxu0 0.0
    %378 = vmatprep.subr.mxu0 0.0
    %379 = vmatpush2.msra.mxu0 0.0
    %380 = vmatprep.subr.mxu0 0.0
    %381 = vmatpush2.msra.mxu0 0.0
    %382 = vmatprep.subr.mxu0 0.0
    %383 = vmatpush2.msra.mxu0 0.0
    %384 = vmatprep.mubr.f32.mxu0 0.0
    %385 = vmatmul.mubr.f32.gmra.mxu0 %v305
    %v386 = vpop.f32.mrf.mxu0
    %v387 = vadd.f32 %v228, %v386
    %v388 = vpop.f32.mrf.mxu0
    %v389 = vadd.f32 %v230, %v388
    %390 = vdwg.mxu0
    %391 = vmatprep.subr.mxu0 0.0
    %392 = vmatpush1.msra.mxu0 0.0
    %393 = vmatprep.subr.mxu0 0.0
    %394 = vmatpush1.msra.mxu0 0.0
    %395 = vmatprep.subr.mxu0 0.0
    %396 = vmatpush1.msra.mxu0 0.0
    %397 = vmatprep.subr.mxu0 0.0
    %398 = vmatpush1.msra.mxu0 0.0
    %399 = vmatprep.subr.mxu0 0.0
    %400 = vmatpush1.msra.mxu0 0.0
    %401 = vmatprep.subr.mxu0 0.0
    %402 = vmatpush1.msra.mxu0 0.0
    %403 = vmatprep.subr.mxu0 0.0
    %404 = vmatpush1.msra.mxu0 0.0
    %405 = vmatprep.subr.mxu0 0.0
    %406 = vmatpush1.msra.mxu0 0.0
    %407 = vmatprep.subr.mxu0 0.0
    %408 = vmatpush1.msra.mxu0 0.0
    %409 = vmatprep.subr.mxu0 0.0
    %410 = vmatpush1.msra.mxu0 0.0
    %411 = vmatprep.subr.mxu0 0.0
    %412 = vmatpush1.msra.mxu0 0.0
    %413 = vmatprep.subr.mxu0 0.0
    %414 = vmatpush1.msra.mxu0 0.0
    %415 = vmatprep.subr.mxu0 0.0
    %416 = vmatpush1.msra.mxu0 0.0
    %417 = vmatprep.subr.mxu0 %v318
    %418 = vmatpush1.msra.mxu0 %v315
    %419 = vmatprep.subr.mxu0 %v134
    %420 = vmatpush1.msra.mxu0 %v133
    %421 = vmatprep.subr.mxu0 %v130
    %422 = vmatpush1.msra.mxu0 %v129
    %423 = vmatprep.subr.mxu0 0.0
    %424 = vmatpush2.msra.mxu0 0.0
    %425 = vmatprep.subr.mxu0 0.0
    %426 = vmatpush2.msra.mxu0 0.0
    %427 = vmatprep.subr.mxu0 0.0
    %428 = vmatpush2.msra.mxu0 0.0
    %429 = vmatprep.subr.mxu0 0.0
    %430 = vmatpush2.msra.mxu0 0.0
    %431 = vmatprep.subr.mxu0 0.0
    %432 = vmatpush2.msra.mxu0 0.0
    %433 = vmatprep.subr.mxu0 0.0
    %434 = vmatpush2.msra.mxu0 0.0
    %435 = vmatprep.subr.mxu0 0.0
    %436 = vmatpush2.msra.mxu0 0.0
    %437 = vmatprep.subr.mxu0 0.0
    %438 = vmatpush2.msra.mxu0 0.0
    %439 = vmatprep.subr.mxu0 0.0
    %440 = vmatpush2.msra.mxu0 0.0
    %441 = vmatprep.subr.mxu0 0.0
    %442 = vmatpush2.msra.mxu0 0.0
    %443 = vmatprep.subr.mxu0 0.0
    %444 = vmatpush2.msra.mxu0 0.0
    %445 = vmatprep.subr.mxu0 0.0
    %446 = vmatpush2.msra.mxu0 0.0
    %447 = vmatprep.subr.mxu0 0.0
    %448 = vmatpush2.msra.mxu0 0.0
    %449 = vmatprep.subr.mxu0 0.0
    %450 = vmatpush2.msra.mxu0 0.0
    %451 = vmatprep.subr.mxu0 0.0
    %452 = vmatpush2.msra.mxu0 0.0
    %453 = vmatprep.subr.mxu0 0.0
    %454 = vmatpush2.msra.mxu0 0.0
    %455 = vmatprep.mubr.f32.mxu0 0.0
    %456 = vmatmul.mubr.f32.gmra.mxu0 %v305
    %v457 = vpop.f32.mrf.mxu0
    %v458 = vadd.f32 %v299, %v457
    %v459 = vpop.f32.mrf.mxu0
    %v460 = vadd.f32 %v301, %v459
    %461 = vdwg.mxu0
    %v462 = vld [vmem:[%s4] sm:$0xf]
    %v464 = vlaneseq
    %v465 = vshrl.u32 %v464, 7
    %v466 = vsub.s32 0, %v465
    %v467 = vrot.slane %v462, %v466
    %v468 = vlaneseq
    %v469 = vshrl.u32 %v468, 7
    %v470 = vsub.s32 1, %v469
    %v471 = vrot.slane %v462, %v470
    %v472 = vlaneseq
    %v473 = vshrl.u32 %v472, 7
    %v474 = vsub.s32 2, %v473
    %v475 = vrot.slane %v462, %v474
    %v476 = vlaneseq
    %v477 = vshrl.u32 %v476, 7
    %v478 = vsub.s32 3, %v477
    %v479 = vrot.slane %v462, %v478
    %v484 = vadd.f32 %v387, %v467
    %v485 = vadd.f32 %v389, %v471
    %v486 = vadd.f32 %v458, %v475
    %v487 = vadd.f32 %v460, %v479
    %v488 = vmax.f32 %v484, 0.0
    %v489 = vmax.f32 %v485, 0.0
    %v490 = vmax.f32 %v486, 0.0
    %v491 = vmax.f32 %v487, 0.0
    %v492 = vld [vmem:[#allocation11] sm:$0xff]
    %v493 = vld [vmem:[#allocation11 + $0x8] sm:$0xff]
    %v494 = vld [vmem:[#allocation11 + $0x10] sm:$0xff]
    %v495 = vld [vmem:[#allocation11 + $0x18] sm:$0xff]
    %v496 = vld [vmem:[#allocation11 + $0x20] sm:$0xff]
    %v497 = vld [vmem:[#allocation11 + $0x28] sm:$0xff]
    %v498 = vld [vmem:[#allocation11 + $0x30] sm:$0xff]
    %v499 = vld [vmem:[#allocation11 + $0x38] sm:$0xff]
    %v500 = vld [vmem:[#allocation11 + $0x40] sm:$0xff]
    %v501 = vld [vmem:[#allocation11 + $0x48] sm:$0xff]
    %v502 = vld [vmem:[#allocation11 + $0x50] sm:$0xff]
    %v503 = vld [vmem:[#allocation11 + $0x58] sm:$0xff]
    %v504 = vld [vmem:[#allocation11 + $0x60] sm:$0xff]
    %v505 = vld [vmem:[#allocation11 + $0x68] sm:$0xff]
    %v506 = vld [vmem:[#allocation11 + $0x70] sm:$0xff]
    %v507 = vld [vmem:[#allocation11 + $0x78] sm:$0xff]
    %v508 = vld [vmem:[#allocation11 + $0x80] sm:$0xff]
    %v509 = vld [vmem:[#allocation11 + $0x88] sm:$0xff]
    %v510 = vld [vmem:[#allocation11 + $0x90] sm:$0xff]
    %v511 = vld [vmem:[#allocation11 + $0x98] sm:$0xff]
    %v512 = vld [vmem:[#allocation11 + $0xa0] sm:$0xff]
    %v513 = vld [vmem:[#allocation11 + $0xa8] sm:$0xff]
    %v514 = vld [vmem:[#allocation11 + $0xb0] sm:$0xff]
    %v515 = vld [vmem:[#allocation11 + $0xb8] sm:$0xff]
    %v516 = vld [vmem:[#allocation11 + $0xc0] sm:$0xff]
    %v517 = vld [vmem:[#allocation11 + $0xc8] sm:$0xff]
    %v518 = vld [vmem:[#allocation11 + $0xd0] sm:$0xff]
    %v519 = vld [vmem:[#allocation11 + $0xd8] sm:$0xff]
    %v520 = vld [vmem:[#allocation11 + $0xe0] sm:$0xff]
    %v521 = vld [vmem:[#allocation11 + $0xe8] sm:$0xff]
    %v522 = vld [vmem:[#allocation11 + $0xf0] sm:$0xff]
    %v523 = vld [vmem:[#allocation11 + $0xf8] sm:$0xff]
    %v524 = vld [vmem:[#allocation11 + $0x100] sm:$0xff]
    %v525 = vld [vmem:[#allocation11 + $0x108] sm:$0xff]
    %v526 = vld [vmem:[#allocation11 + $0x110] sm:$0xff]
    %v527 = vld [vmem:[#allocation11 + $0x118] sm:$0xff]
    %v528 = vld [vmem:[#allocation11 + $0x120] sm:$0xff]
    %v529 = vld [vmem:[#allocation11 + $0x128] sm:$0xff]
    %v530 = vld [vmem:[#allocation11 + $0x130] sm:$0xff]
    %v531 = vld [vmem:[#allocation11 + $0x138] sm:$0xff]
    %v532 = vld [vmem:[#allocation11 + $0x140] sm:$0xff]
    %v533 = vld [vmem:[#allocation11 + $0x148] sm:$0xff]
    %v534 = vld [vmem:[#allocation11 + $0x150] sm:$0xff]
    %v535 = vld [vmem:[#allocation11 + $0x158] sm:$0xff]
    %v536 = vld [vmem:[#allocation11 + $0x160] sm:$0xff]
    %v537 = vld [vmem:[#allocation11 + $0x168] sm:$0xff]
    %v538 = vld [vmem:[#allocation11 + $0x170] sm:$0xff]
    %v539 = vld [vmem:[#allocation11 + $0x178] sm:$0xff]
    %v540 = vld [vmem:[#allocation11 + $0x180] sm:$0xff]
    %v541 = vld [vmem:[#allocation11 + $0x188] sm:$0xff]
    %v542 = vld [vmem:[#allocation11 + $0x190] sm:$0xff]
    %v543 = vld [vmem:[#allocation11 + $0x198] sm:$0xff]
    %v544 = vld [vmem:[#allocation11 + $0x1a0] sm:$0xff]
    %v545 = vld [vmem:[#allocation11 + $0x1a8] sm:$0xff]
    %v546 = vld [vmem:[#allocation11 + $0x1b0] sm:$0xff]
    %v547 = vld [vmem:[#allocation11 + $0x1b8] sm:$0xff]
    %v548 = vld [vmem:[#allocation11 + $0x1c0] sm:$0xff]
    %v549 = vld [vmem:[#allocation11 + $0x1c8] sm:$0xff]
    %v550 = vld [vmem:[#allocation11 + $0x1d0] sm:$0xff]
    %v551 = vld [vmem:[#allocation11 + $0x1d8] sm:$0xff]
    %v552 = vld [vmem:[#allocation11 + $0x1e0] sm:$0xff]
    %v553 = vld [vmem:[#allocation11 + $0x1e8] sm:$0xff]
    %v554 = vld [vmem:[#allocation11 + $0x1f0] sm:$0xff]
    %v555 = vld [vmem:[#allocation11 + $0x1f8] sm:$0xff]
    %v556 = vld [vmem:[%s6] sm:$0x3]
    %v558 = vlaneseq
    %v559 = vshrl.u32 %v558, 7
    %v560 = vsub.s32 0, %v559
    %v561 = vrot.slane %v556, %v560
    %v562 = vlaneseq
    %v563 = vshrl.u32 %v562, 7
    %v564 = vsub.s32 1, %v563
    %v565 = vrot.slane %v556, %v564
    %568 = vmatprep.subr.mxu0 %v523
    %569 = vmatpush1.msra.mxu0 %v522
    %570 = vmatprep.subr.mxu0 %v521
    %571 = vmatpush1.msra.mxu0 %v520
    %572 = vmatprep.subr.mxu0 %v519
    %573 = vmatpush1.msra.mxu0 %v518
    %574 = vmatprep.subr.mxu0 %v517
    %575 = vmatpush1.msra.mxu0 %v516
    %576 = vmatprep.subr.mxu0 %v515
    %577 = vmatpush1.msra.mxu0 %v514
    %578 = vmatprep.subr.mxu0 %v513
    %579 = vmatpush1.msra.mxu0 %v512
    %580 = vmatprep.subr.mxu0 %v511
    %581 = vmatpush1.msra.mxu0 %v510
    %582 = vmatprep.subr.mxu0 %v509
    %583 = vmatpush1.msra.mxu0 %v508
    %584 = vmatprep.subr.mxu0 %v507
    %585 = vmatpush1.msra.mxu0 %v506
    %586 = vmatprep.subr.mxu0 %v505
    %587 = vmatpush1.msra.mxu0 %v504
    %588 = vmatprep.subr.mxu0 %v503
    %589 = vmatpush1.msra.mxu0 %v502
    %590 = vmatprep.subr.mxu0 %v501
    %591 = vmatpush1.msra.mxu0 %v500
    %592 = vmatprep.subr.mxu0 %v499
    %593 = vmatpush1.msra.mxu0 %v498
    %594 = vmatprep.subr.mxu0 %v497
    %595 = vmatpush1.msra.mxu0 %v496
    %596 = vmatprep.subr.mxu0 %v495
    %597 = vmatpush1.msra.mxu0 %v494
    %598 = vmatprep.subr.mxu0 %v493
    %599 = vmatpush1.msra.mxu0 %v492
    %600 = vmatprep.subr.mxu0 %v555
    %601 = vmatpush2.msra.mxu0 %v554
    %602 = vmatprep.subr.mxu0 %v553
    %603 = vmatpush2.msra.mxu0 %v552
    %604 = vmatprep.subr.mxu0 %v551
    %605 = vmatpush2.msra.mxu0 %v550
    %606 = vmatprep.subr.mxu0 %v549
    %607 = vmatpush2.msra.mxu0 %v548
    %608 = vmatprep.subr.mxu0 %v547
    %609 = vmatpush2.msra.mxu0 %v546
    %610 = vmatprep.subr.mxu0 %v545
    %611 = vmatpush2.msra.mxu0 %v544
    %612 = vmatprep.subr.mxu0 %v543
    %613 = vmatpush2.msra.mxu0 %v542
    %614 = vmatprep.subr.mxu0 %v541
    %615 = vmatpush2.msra.mxu0 %v540
    %616 = vmatprep.subr.mxu0 %v539
    %617 = vmatpush2.msra.mxu0 %v538
    %618 = vmatprep.subr.mxu0 %v537
    %619 = vmatpush2.msra.mxu0 %v536
    %620 = vmatprep.subr.mxu0 %v535
    %621 = vmatpush2.msra.mxu0 %v534
    %622 = vmatprep.subr.mxu0 %v533
    %623 = vmatpush2.msra.mxu0 %v532
    %624 = vmatprep.subr.mxu0 %v531
    %625 = vmatpush2.msra.mxu0 %v530
    %626 = vmatprep.subr.mxu0 %v529
    %627 = vmatpush2.msra.mxu0 %v528
    %628 = vmatprep.subr.mxu0 %v527
    %629 = vmatpush2.msra.mxu0 %v526
    %630 = vmatprep.subr.mxu0 %v525
    %631 = vmatpush2.msra.mxu0 %v524
    %632 = vmatprep.mubr.f32.mxu0 %v489
    %633 = vmatmul.mubr.f32.gmra.mxu0 %v488
    %v634 = vpop.f32.mrf.mxu0
    %v635 = vadd.f32 %v561, %v634
    %v636 = vpop.f32.mrf.mxu0
    %v637 = vadd.f32 %v565, %v636
    %638 = vdwg.mxu0
    %v639 = vmax.f32 %v635, 0.0
    %v640 = vmax.f32 %v637, 0.0
    %v641 = vld [vmem:[#allocation12] sm:$0xff]
    %v642 = vld [vmem:[#allocation12 + $0x8] sm:$0xff]
    %v643 = vld [vmem:[#allocation12 + $0x10] sm:$0xff]
    %v644 = vld [vmem:[#allocation12 + $0x18] sm:$0xff]
    %v645 = vld [vmem:[#allocation12 + $0x20] sm:$0xff]
    %v646 = vld [vmem:[#allocation12 + $0x28] sm:$0xff]
    %v647 = vld [vmem:[#allocation12 + $0x30] sm:$0xff]
    %v648 = vld [vmem:[#allocation12 + $0x38] sm:$0xff]
    %v649 = vld [vmem:[#allocation12 + $0x40] sm:$0xff]
    %v650 = vld [vmem:[#allocation12 + $0x48] sm:$0xff]
    %v651 = vld [vmem:[#allocation12 + $0x50] sm:$0xff]
    %v652 = vld [vmem:[#allocation12 + $0x58] sm:$0xff]
    %v653 = vld [vmem:[#allocation12 + $0x60] sm:$0xff]
    %v654 = vld [vmem:[#allocation12 + $0x68] sm:$0xff]
    %v655 = vld [vmem:[#allocation12 + $0x70] sm:$0xff]
    %v656 = vld [vmem:[#allocation12 + $0x78] sm:$0xff]
    %v657 = vld [vmem:[#allocation12 + $0x80] sm:$0xff]
    %v658 = vld [vmem:[#allocation12 + $0x88] sm:$0xff]
    %v659 = vld [vmem:[#allocation12 + $0x90] sm:$0xff]
    %v660 = vld [vmem:[#allocation12 + $0x98] sm:$0xff]
    %v661 = vld [vmem:[#allocation12 + $0xa0] sm:$0xff]
    %v662 = vld [vmem:[#allocation12 + $0xa8] sm:$0xff]
    %v663 = vld [vmem:[#allocation12 + $0xb0] sm:$0xff]
    %v664 = vld [vmem:[#allocation12 + $0xb8] sm:$0xff]
    %v665 = vld [vmem:[#allocation12 + $0xc0] sm:$0xff]
    %v666 = vld [vmem:[#allocation12 + $0xc8] sm:$0xff]
    %v667 = vld [vmem:[#allocation12 + $0xd0] sm:$0xff]
    %v668 = vld [vmem:[#allocation12 + $0xd8] sm:$0xff]
    %v669 = vld [vmem:[#allocation12 + $0xe0] sm:$0xff]
    %v670 = vld [vmem:[#allocation12 + $0xe8] sm:$0xff]
    %v671 = vld [vmem:[#allocation12 + $0xf0] sm:$0xff]
    %v672 = vld [vmem:[#allocation12 + $0xf8] sm:$0xff]
    %v673 = vld [vmem:[#allocation12 + $0x100] sm:$0xff]
    %v674 = vld [vmem:[#allocation12 + $0x108] sm:$0xff]
    %v675 = vld [vmem:[#allocation12 + $0x110] sm:$0xff]
    %v676 = vld [vmem:[#allocation12 + $0x118] sm:$0xff]
    %v677 = vld [vmem:[#allocation12 + $0x120] sm:$0xff]
    %v678 = vld [vmem:[#allocation12 + $0x128] sm:$0xff]
    %v679 = vld [vmem:[#allocation12 + $0x130] sm:$0xff]
    %v680 = vld [vmem:[#allocation12 + $0x138] sm:$0xff]
    %v681 = vld [vmem:[#allocation12 + $0x140] sm:$0xff]
    %v682 = vld [vmem:[#allocation12 + $0x148] sm:$0xff]
    %v683 = vld [vmem:[#allocation12 + $0x150] sm:$0xff]
    %v684 = vld [vmem:[#allocation12 + $0x158] sm:$0xff]
    %v685 = vld [vmem:[#allocation12 + $0x160] sm:$0xff]
    %v686 = vld [vmem:[#allocation12 + $0x168] sm:$0xff]
    %v687 = vld [vmem:[#allocation12 + $0x170] sm:$0xff]
    %v688 = vld [vmem:[#allocation12 + $0x178] sm:$0xff]
    %v689 = vld [vmem:[#allocation12 + $0x180] sm:$0xff]
    %v690 = vld [vmem:[#allocation12 + $0x188] sm:$0xff]
    %v691 = vld [vmem:[#allocation12 + $0x190] sm:$0xff]
    %v692 = vld [vmem:[#allocation12 + $0x198] sm:$0xff]
    %v693 = vld [vmem:[#allocation12 + $0x1a0] sm:$0xff]
    %v694 = vld [vmem:[#allocation12 + $0x1a8] sm:$0xff]
    %v695 = vld [vmem:[#allocation12 + $0x1b0] sm:$0xff]
    %v696 = vld [vmem:[#allocation12 + $0x1b8] sm:$0xff]
    %v697 = vld [vmem:[#allocation12 + $0x1c0] sm:$0xff]
    %v698 = vld [vmem:[#allocation12 + $0x1c8] sm:$0xff]
    %v699 = vld [vmem:[#allocation12 + $0x1d0] sm:$0xff]
    %v700 = vld [vmem:[#allocation12 + $0x1d8] sm:$0xff]
    %v701 = vld [vmem:[#allocation12 + $0x1e0] sm:$0xff]
    %v702 = vld [vmem:[#allocation12 + $0x1e8] sm:$0xff]
    %v703 = vld [vmem:[#allocation12 + $0x1f0] sm:$0xff]
    %v704 = vld [vmem:[#allocation12 + $0x1f8] sm:$0xff]
    %v705 = vld [vmem:[%s8] sm:$0x3]
    %v707 = vlaneseq
    %v708 = vshrl.u32 %v707, 7
    %v709 = vsub.s32 0, %v708
    %v710 = vrot.slane %v705, %v709
    %v711 = vlaneseq
    %v712 = vshrl.u32 %v711, 7
    %v713 = vsub.s32 1, %v712
    %v714 = vrot.slane %v705, %v713
    %717 = vmatprep.subr.mxu0 %v672
    %718 = vmatpush1.msra.mxu0 %v671
    %719 = vmatprep.subr.mxu0 %v670
    %720 = vmatpush1.msra.mxu0 %v669
    %721 = vmatprep.subr.mxu0 %v668
    %722 = vmatpush1.msra.mxu0 %v667
    %723 = vmatprep.subr.mxu0 %v666
    %724 = vmatpush1.msra.mxu0 %v665
    %725 = vmatprep.subr.mxu0 %v664
    %726 = vmatpush1.msra.mxu0 %v663
    %727 = vmatprep.subr.mxu0 %v662
    %728 = vmatpush1.msra.mxu0 %v661
    %729 = vmatprep.subr.mxu0 %v660
    %730 = vmatpush1.msra.mxu0 %v659
    %731 = vmatprep.subr.mxu0 %v658
    %732 = vmatpush1.msra.mxu0 %v657
    %733 = vmatprep.subr.mxu0 %v656
    %734 = vmatpush1.msra.mxu0 %v655
    %735 = vmatprep.subr.mxu0 %v654
    %736 = vmatpush1.msra.mxu0 %v653
    %737 = vmatprep.subr.mxu0 %v652
    %738 = vmatpush1.msra.mxu0 %v651
    %739 = vmatprep.subr.mxu0 %v650
    %740 = vmatpush1.msra.mxu0 %v649
    %741 = vmatprep.subr.mxu0 %v648
    %742 = vmatpush1.msra.mxu0 %v647
    %743 = vmatprep.subr.mxu0 %v646
    %744 = vmatpush1.msra.mxu0 %v645
    %745 = vmatprep.subr.mxu0 %v644
    %746 = vmatpush1.msra.mxu0 %v643
    %747 = vmatprep.subr.mxu0 %v642
    %748 = vmatpush1.msra.mxu0 %v641
    %749 = vmatprep.subr.mxu0 %v704
    %750 = vmatpush2.msra.mxu0 %v703
    %751 = vmatprep.subr.mxu0 %v702
    %752 = vmatpush2.msra.mxu0 %v701
    %753 = vmatprep.subr.mxu0 %v700
    %754 = vmatpush2.msra.mxu0 %v699
    %755 = vmatprep.subr.mxu0 %v698
    %756 = vmatpush2.msra.mxu0 %v697
    %757 = vmatprep.subr.mxu0 %v696
    %758 = vmatpush2.msra.mxu0 %v695
    %759 = vmatprep.subr.mxu0 %v694
    %760 = vmatpush2.msra.mxu0 %v693
    %761 = vmatprep.subr.mxu0 %v692
    %762 = vmatpush2.msra.mxu0 %v691
    %763 = vmatprep.subr.mxu0 %v690
    %764 = vmatpush2.msra.mxu0 %v689
    %765 = vmatprep.subr.mxu0 %v688
    %766 = vmatpush2.msra.mxu0 %v687
    %767 = vmatprep.subr.mxu0 %v686
    %768 = vmatpush2.msra.mxu0 %v685
    %769 = vmatprep.subr.mxu0 %v684
    %770 = vmatpush2.msra.mxu0 %v683
    %771 = vmatprep.subr.mxu0 %v682
    %772 = vmatpush2.msra.mxu0 %v681
    %773 = vmatprep.subr.mxu0 %v680
    %774 = vmatpush2.msra.mxu0 %v679
    %775 = vmatprep.subr.mxu0 %v678
    %776 = vmatpush2.msra.mxu0 %v677
    %777 = vmatprep.subr.mxu0 %v676
    %778 = vmatpush2.msra.mxu0 %v675
    %779 = vmatprep.subr.mxu0 %v674
    %780 = vmatpush2.msra.mxu0 %v673
    %781 = vmatprep.mubr.f32.mxu0 %v491
    %782 = vmatmul.mubr.f32.gmra.mxu0 %v490
    %v783 = vpop.f32.mrf.mxu0
    %v784 = vadd.f32 %v710, %v783
    %v785 = vpop.f32.mrf.mxu0
    %v786 = vadd.f32 %v714, %v785
    %787 = vdwg.mxu0
    %v788 = vmax.f32 %v784, 0.0
    %v789 = vmax.f32 %v786, 0.0
    %v790 = vld [vmem:[%s9] sm:$0x3]
    %v792 = vlaneseq
    %v793 = vshrl.u32 %v792, 7
    %v794 = vsub.s32 0, %v793
    %v795 = vrot.slane %v790, %v794
    %v796 = vlaneseq
    %v797 = vshrl.u32 %v796, 7
    %v798 = vsub.s32 1, %v797
    %v799 = vrot.slane %v790, %v798
    %v802 = vmul.f32 %v639, %v795
    %v803 = vmul.f32 %v640, %v799
    %v804 = vadd.f32 %v802, %v803
    %805 = vadd.xlane.f32.xlu0 %v804
    %v806 = vpop.xlane.xlu0 %805
    %v807 = vld [vmem:[#allocation2] sm:$0x1]
    %v809 = vlaneseq
    %v810 = vshrl.u32 %v809, 7
    %v811 = vsub.s32 0, %v810
    %v812 = vrot.slane %v807, %v811
    %v814 = vadd.f32 %v806, %v812
    %vm815 = vcmask 7168
    %816 = vst.msk [vmem:[%s13] sm:$0xff] %vm815, %v814
    %v817 = vld [vmem:[%s11] sm:$0x3]
    %v819 = vlaneseq
    %v820 = vshrl.u32 %v819, 7
    %v821 = vsub.s32 0, %v820
    %v822 = vrot.slane %v817, %v821
    %v823 = vlaneseq
    %v824 = vshrl.u32 %v823, 7
    %v825 = vsub.s32 1, %v824
    %v826 = vrot.slane %v817, %v825
    %v829 = vmul.f32 %v788, %v822
    %v830 = vmul.f32 %v789, %v826
    %v831 = vadd.f32 %v829, %v830
    %832 = vadd.xlane.f32.xlu0 %v831
    %v833 = vpop.xlane.xlu0 %832
    %v834 = vld [vmem:[#allocation3] sm:$0x1]
    %v836 = vlaneseq
    %v837 = vshrl.u32 %v836, 7
    %v838 = vsub.s32 0, %v837
    %v839 = vrot.slane %v834, %v838
    %v841 = vadd.f32 %v833, %v839
    %842 = vst.msk [vmem:[%s14] sm:$0xff] %vm815, %v841
    // Predicated region
    $region78: #{critic_forward.1} parent=1 // pred_check
      _
    $region79: #{critic_forward.1} parent=1 // pred_check_branch
      %844 = sbr.rel (0) target = $region81
    $region80: #{critic_forward.1} parent=1 // pred_region
      _
    $region81: #{critic_forward.1} parent=1 // pred_fallthru
      _
    // Predicated region
    $region82: #{critic_forward.1} parent=1 // pred_check
      _
    $region83: #{critic_forward.1} parent=1 // pred_check_branch
      %846 = sbr.rel (0) target = $region85
    $region84: #{critic_forward.1} parent=1 // pred_region
      _
    $region85: #{critic_forward.1} parent=1 // pred_fallthru
      _
    // Predicated region
    $region86: #{critic_forward.1} parent=1 // pred_check
      _
    $region87: #{critic_forward.1} parent=1 // pred_check_branch
      %848 = sbr.rel (0) target = $region89
    $region88: #{critic_forward.1} parent=1 // pred_region
      _
    $region89: #{critic_forward.1} parent=1 // pred_fallthru
      _
    // Predicated region
    $region90: #{critic_forward.1} parent=1 // pred_check
      _
    $region91: #{critic_forward.1} parent=1 // pred_check_branch
      %850 = sbr.rel (0) target = $region93
    $region92: #{critic_forward.1} parent=1 // pred_region
      _
    $region93: #{critic_forward.1} parent=1 // pred_fallthru
      _
    %851 = vsyncpa [#allocation5], 1
    %852 = vsyncpa [#allocation7], 1
    %853 = vsyncpa [#allocation10], 1
    %854 = vsyncpa [#allocation13], 1

</llo_original>
